<compile_context>
chip_gen: v7x
topology: tpu7x:2x2x1
jax: 0.10.0
libtpu: 0.0.40
codegen_flags: <defaults>
</compile_context>

<pallas_src>
import functools

import jax
import jax.numpy as jnp
from jax.experimental import pallas as pl
from jax.experimental.pallas import tpu as pltpu


def _loss_kernel(t_ref, s_ref, o_ref, *, c):
    # t_ref: (L, TB) full level stack, s_ref: (1, TB), o_ref: (1, TB)
    # Only rows 0..c-1 of t contribute; c is a static Python int, so this is a
    # free static sub-view followed by a VMEM load.  Cast to f32 on the VPU
    # (keeps bf16 inputs at half the HBM traffic); sublane reduce hits the XLU.
    t = t_ref[0:c, :].astype(jnp.float32)
    s = s_ref[...].astype(jnp.float32)
    o_ref[...] = jnp.sum(jnp.abs(t - s), axis=0, keepdims=True)


def distillation_loss(t_logdet, s_logdet, compress_factor=2, tile_b=4096,
                      min_pallas_elems=32768):
    """t_logdet, s_logdet: (L, B) arrays (stacked list of per-sample logdets)."""
    L, B = t_logdet.shape
    assert s_logdet.shape[0] >= 1 and s_logdet.shape[1] == B, (
        "teacher/student logdet entries must stack to a common (B,) shape")
    c = int(compress_factor)

    if L == 0 or c < 1:
        # PyTorch would return the Python int 0 (no terms accumulated).
        # Return a shape-stable (B,) zero instead so callers / jit see one shape.
        return jnp.zeros((B,), dtype=jnp.float32)
    if c > L:
        # PyTorch would raise an IndexError on t_logdet[j]; mirror that.
        raise ValueError(f"compress_factor={c} > len(t_logdet)={L}")

    # Small-input fast path: for a few-thousand-element problem the fused XLA
    # elementwise is strictly faster than a pallas_call launch.
    if (c + 1) * B < int(min_pallas_elems):
        return jnp.sum(
            jnp.abs(t_logdet[:c].astype(jnp.float32)
                    - s_logdet[:1].astype(jnp.float32)),
            axis=0)

    # Only row 0 of s contributes; this 1-row slice is negligible HBM traffic.
    s_used = s_logdet[:1]  # (1, B)

    # Lane-dense tiling over B (tiles are multiples of 128 -> unmasked stores
    # except at the ragged edge, which Pallas handles).
    b128 = pl.cdiv(B, 128) * 128
    TB = max(128, (min(int(tile_b), b128) // 128) * 128)

    # v5e guard: keep double-buffered blocks (t (L,TB) + s (1,TB) + out (1,TB))
    # comfortably under the 16 MiB default scoped-VMEM limit.
    max_tb = (8 * 1024 * 1024) // (2 * (L + 2) * 4)
    max_tb = max(128, (max_tb // 128) * 128)
    TB = min(TB, max_tb)

    n_tiles = pl.cdiv(B, TB)
    if n_tiles == 1 and b128 >= 256:
        # v7x megacore: keep >= 2 steps on the parallel axis so both
        # TensorCores stream their half of B (no-op on v5e/v6e).
        TB = pl.cdiv(pl.cdiv(B, 2), 128) * 128
        n_tiles = pl.cdiv(B, TB)

    out = pl.pallas_call(
        functools.partial(_loss_kernel, c=c),
        out_shape=jax.ShapeDtypeStruct((1, B), jnp.float32),
        grid=(n_tiles,),
        in_specs=[
            pl.BlockSpec((L, TB), lambda b: (0, b)),   # full level stack, sliced in-kernel
            pl.BlockSpec((1, TB), lambda b: (0, b)),
        ],
        out_specs=pl.BlockSpec((1, TB), lambda b: (0, b)),
        compiler_params=pltpu.CompilerParams(
            dimension_semantics=("parallel",)),
    )(t_logdet, s_used)

    return out[0]  # (B,), the broadcast loss tensor shape of the PyTorch module


def _torch_style_reference(t, s, c):
    """Pure-JAX reference mirroring the PyTorch loops exactly (f32 accumulation)."""
    L, B = t.shape
    loss = jnp.zeros((B,), dtype=jnp.float32)
    for i in range(0, L, c):
        for j in range(i, c):
            loss = loss + jnp.abs(t[j].astype(jnp.float32) - s[i].astype(jnp.float32))
    return loss


if __name__ == "__main__":
    key = jax.random.PRNGKey(0)
    k1, k2, k3, k4, k5, k6 = jax.random.split(key, 6)

    # 1) Small case (4 flow levels, batch of 8 logdets): exercises the
    #    fused-XLA fast path (non-128-aligned B, c == 2 and c == L).
    L, B = 4, 8
    t = jax.random.normal(k1, (L, B), dtype=jnp.float32)
    s = jax.random.normal(k2, (L, B), dtype=jnp.float32)
    out = jax.block_until_ready(distillation_loss(t, s, compress_factor=2))
    ref = _torch_style_reference(t, s, 2)
    assert out.shape == (B,), out.shape
    assert jnp.allclose(out, ref, atol=1e-5), (out, ref)

    out_cL = jax.block_until_ready(distillation_loss(t, s, compress_factor=L))
    ref_cL = _torch_style_reference(t, s, L)
    assert jnp.allclose(out_cL, ref_cL, atol=1e-5), (out_cL, ref_cL)

    # 2) bf16 case forcing the Pallas path with 2 lane tiles of 512.
    L2, B2 = 6, 1024
    t2 = jax.random.normal(k3, (L2, B2), dtype=jnp.bfloat16)
    s2 = jax.random.normal(k4, (L2, B2), dtype=jnp.bfloat16)
    out2 = jax.block_until_ready(
        distillation_loss(t2, s2, compress_factor=2, tile_b=512, min_pallas_elems=0))
    ref2 = _torch_style_reference(t2, s2, 2)
    assert out2.shape == (B2,), out2.shape
    assert jnp.allclose(out2, ref2, atol=1e-5), (out2, ref2)

    # 3) Ragged lane tiles (B not a multiple of 128), c = 3, Pallas path with
    #    the v7x two-tile split (no pad, partial last block).
    L3, B3 = 5, 1000
    t3 = jax.random.normal(k5, (L3, B3), dtype=jnp.float32)
    s3 = jax.random.normal(k6, (L3, B3), dtype=jnp.float32)
    out3 = jax.block_until_ready(
        distillation_loss(t3, s3, compress_factor=3, min_pallas_elems=0))
    ref3 = _torch_style_reference(t3, s3, 3)
    assert out3.shape == (B3,), out3.shape
    assert jnp.allclose(out3, ref3, atol=1e-5), (out3, ref3)

    print("KERNEL_OK")
</pallas_src>

<mosaic_0001>
module attributes {stable_mosaic.version = 11 : i64} {
  func.func @_loss_kernel(%arg0: i32, %arg1: memref<6x512xbf16, #tpu.memory_space<vmem>>, %arg2: memref<1x512xbf16, #tpu.memory_space<vmem>>, %arg3: memref<1x512xf32, #tpu.memory_space<vmem>>) attributes {dimension_semantics = [#tpu.dimension_semantics<parallel>], iteration_bounds = array<i64: 2>, scalar_prefetch = 0 : i64, scratch_operands = 0 : i64, tpu.core_type = #tpu.core_type<tc>, window_params = [{transform_indices = @transform_0, window_bounds = array<i64: 6, 512>}, {transform_indices = @transform_1, window_bounds = array<i64: 1, 512>}, {transform_indices = @transform_2, window_bounds = array<i64: 1, 512>}]} {
    %c0 = arith.constant 0 : index
    %c0_0 = arith.constant 0 : index
    %0 = vector.load %arg1[%c0, %c0_0] : memref<6x512xbf16, #tpu.memory_space<vmem>>, vector<2x512xbf16>
    %1 = arith.extf %0 : vector<2x512xbf16> to vector<2x512xf32>
    %c0_1 = arith.constant 0 : index
    %c0_2 = arith.constant 0 : index
    %2 = vector.load %arg2[%c0_1, %c0_2] : memref<1x512xbf16, #tpu.memory_space<vmem>>, vector<1x512xbf16>
    %3 = arith.extf %2 : vector<1x512xbf16> to vector<1x512xf32>
    %4 = vector.broadcast %3 : vector<1x512xf32> to vector<2x512xf32>
    %5 = arith.subf %1, %4 : vector<2x512xf32>
    %6 = math.absf %5 : vector<2x512xf32>
    %cst = arith.constant dense<0.000000e+00> : vector<512xf32>
    %7 = vector.multi_reduction <add>, %6, %cst [0] : vector<2x512xf32> to vector<512xf32>
    %8 = vector.shape_cast %7 : vector<512xf32> to vector<1x512xf32>
    %c0_3 = arith.constant 0 : index
    %c0_4 = arith.constant 0 : index
    %9 = vector.load %arg3[%c0_3, %c0_4] : memref<1x512xf32, #tpu.memory_space<vmem>>, vector<1x512xf32>
    tpu.vector_store %arg3[%c0_3, %c0_4], %8 {strides = array<i32>} : memref<1x512xf32, #tpu.memory_space<vmem>>, vector<1x512xf32>,
    return
  }
  func.func @transform_0(%arg0: i32) -> (i32, i32) {
    %c0_i32 = arith.constant 0 : i32
    %c0_i32_0 = arith.constant 0 : i32
    return %c0_i32, %arg0 : i32, i32
  }
  func.func @transform_1(%arg0: i32) -> (i32, i32) {
    %c0_i32 = arith.constant 0 : i32
    %c0_i32_0 = arith.constant 0 : i32
    return %c0_i32, %arg0 : i32, i32
  }
  func.func @transform_2(%arg0: i32) -> (i32, i32) {
    %c0_i32 = arith.constant 0 : i32
    %c0_i32_0 = arith.constant 0 : i32
    return %c0_i32, %arg0 : i32, i32
  }
}

</mosaic_0001>

<llo_original>
// kernel: tpu_custom_call.1
$region0: #{tpu_custom_call.1}
  #allocation0 [shape = 'u32[]', space=smem, size = 0x4, offset = 0x4, fixed_abs, tag = 'smem constant byte address 0x4 - core index']
  #allocation1 [shape = 'u32[144,128]{1,0:T(1,128)}', space=vmem, size = 0x12000, scoped, tag = 'internal scratch']
  %s0 = inlined_call_operand.hbm [shape: bf16[6,1024], index: 0, kind: input, shape index: {}]
  %s1 = inlined_call_operand.hbm [shape: bf16[1,1024], index: 1, kind: input, shape index: {}]
  %s2 = inlined_call_operand.hbm [shape: f32[1,1024], index: 2, kind: output, shape index: {}]
  %s3 = sld [smem:[#allocation0]]
  $region49: #{tpu_custom_call.1} parent=0
    _
  %s5 = ssub.s32 1, %s3
  %s6 = scalar_select 0, %s5, %s3
  $region1: #{tpu_custom_call.1} parent=0
    #allocation2 [shape = 'u8[16384]{0}', space=vmem, size = 0x4000, scoped, tag = 'input window, operand 0']
    #allocation3 [shape = 's32[2]{0}', space=sflag, size = 0x8, scoped, tag = 'scoped memory for tpu_custom_call.1']
    #allocation4 [shape = 's32[2]{0}', space=sflag, size = 0x8, scoped, tag = 'scoped memory for tpu_custom_call.1']
    #allocation5 [shape = 'u8[4096]{0}', space=vmem, size = 0x1000, scoped, tag = 'input window, operand 1']
    #allocation6 [shape = 's32[2]{0}', space=sflag, size = 0x8, scoped, tag = 'scoped memory for tpu_custom_call.1']
    #allocation7 [shape = 'u8[4096]{0}', space=vmem, size = 0x1000, scoped, tag = 'output window, operand 0']
    %7 = vsyncpa [#allocation3], 0
    %s8 = scalar_lea.sflag [#allocation3], 1
    %9 = vsyncpa %s8, 0
    %10 = vsyncpa [#allocation6], 0
    %s11 = scalar_lea.sflag [#allocation6], 1
    %12 = vsyncpa %s11, 0
    %13 = vsyncpa [#allocation4], 0
    %s14 = scalar_lea.sflag [#allocation4], 1
    %15 = vsyncpa %s14, 0
    loop: start=0, step=1, limit=4
    $region2: #{tpu_custom_call.1} parent=1 // loop_pre_header
      _
    $region3: #{tpu_custom_call.1} parent=1 // loop_header
      %s17 = sphi 0, %s21
      %p18 = scmp.ge.s32.totalorder %s17, 4
      %s27 = sphi 0, %s29
      %s30 = sphi 0, %s27
      %s31 = sphi 0, %s30
      %s47 = sphi 0, %s31
      %s53 = sphi 0, %s55
      %s56 = sphi 0, %s53
      %s57 = sphi 0, %s56
      %s73 = sphi 0, %s57
      %s79 = sphi 0, %s81
      %s82 = sphi 0, %s79
      %s83 = sphi 0, %s82
      %s99 = sphi 0, %s83
    $region4: #{tpu_custom_call.1} parent=1 // loop_header_branch
      %20 = sbr.rel (%p18) target = $region8
    $region5: #{tpu_custom_call.1} parent=1 // loop_body
      %s22 = ssub.s32 %s17, 1
      %s23 = ssub.s32 %s17, 2
      %s24 = sadd.s32 %s17, 1
      %s25 = ssub.s32 %s17, %s24
      %p26 = scmp.eq.s32.totalorder %s25, 0
      %s28 = sadd.s32 %s27, 1
      %s29 = scalar_select %p26, %s27, %s28
      %p32 = pneg %p26
      %p33 = scmp.eq.s32.totalorder %s17, 1
      %p34 = por %p32, %p33
      %p35 = scmp.ne.s32.totalorder %s27, %s30
      %p36 = scmp.eq.s32.totalorder %s17, 0
      %p37 = por %p35, %p36
      %p38 = scmp.ne.s32.totalorder %s27, %s30
      %p39 = scmp.eq.s32.totalorder %s22, 1
      %p40 = por %p38, %p39
      %p41 = scmp.ne.s32.totalorder %s30, %s31
      %p42 = scmp.eq.s32.totalorder %s22, 0
      %p43 = por %p41, %p42
      %p44 = scmp.ne.s32.totalorder %s30, %s31
      %p45 = scmp.eq.s32.totalorder %s23, 1
      %p46 = por %p44, %p45
      %p48 = scmp.ne.s32.totalorder %s31, %s47
      %p49 = scmp.eq.s32.totalorder %s23, 0
      %p50 = por %p48, %p49
      %s51 = ssub.s32 %s17, %s24
      %p52 = scmp.eq.s32.totalorder %s51, 0
      %s54 = sadd.s32 %s53, 1
      %s55 = scalar_select %p52, %s53, %s54
      %p58 = pneg %p52
      %p59 = scmp.eq.s32.totalorder %s17, 1
      %p60 = por %p58, %p59
      %p61 = scmp.ne.s32.totalorder %s53, %s56
      %p62 = scmp.eq.s32.totalorder %s17, 0
      %p63 = por %p61, %p62
      %p64 = scmp.ne.s32.totalorder %s53, %s56
      %p65 = scmp.eq.s32.totalorder %s22, 1
      %p66 = por %p64, %p65
      %p67 = scmp.ne.s32.totalorder %s56, %s57
      %p68 = scmp.eq.s32.totalorder %s22, 0
      %p69 = por %p67, %p68
      %p70 = scmp.ne.s32.totalorder %s56, %s57
      %p71 = scmp.eq.s32.totalorder %s23, 1
      %p72 = por %p70, %p71
      %p74 = scmp.ne.s32.totalorder %s57, %s73
      %p75 = scmp.eq.s32.totalorder %s23, 0
      %p76 = por %p74, %p75
      %s77 = ssub.s32 %s17, %s24
      %p78 = scmp.eq.s32.totalorder %s77, 0
      %s80 = sadd.s32 %s79, 1
      %s81 = scalar_select %p78, %s79, %s80
      %p84 = pneg %p78
      %p85 = scmp.eq.s32.totalorder %s17, 1
      %p86 = por %p84, %p85
      %p87 = scmp.ne.s32.totalorder %s79, %s82
      %p88 = scmp.eq.s32.totalorder %s17, 0
      %p89 = por %p87, %p88
      %p90 = scmp.ne.s32.totalorder %s79, %s82
      %p91 = scmp.eq.s32.totalorder %s22, 1
      %p92 = por %p90, %p91
      %p93 = scmp.ne.s32.totalorder %s82, %s83
      %p94 = scmp.eq.s32.totalorder %s22, 0
      %p95 = por %p93, %p94
      %p96 = scmp.ne.s32.totalorder %s82, %s83
      %p97 = scmp.eq.s32.totalorder %s23, 1
      %p98 = por %p96, %p97
      %p100 = scmp.ne.s32.totalorder %s83, %s99
      %p101 = scmp.eq.s32.totalorder %s23, 0
      %p102 = por %p100, %p101
      %p103 = scmp.le.s32.totalorder 1, %s17
      %p104 = scmp.lt.s32.totalorder %s17, 3
      %p105 = pnand %p103, %p104
      %p106 = pneg %p105
      // Predicated region
      $region9: #{tpu_custom_call.1} parent=5 // pred_check
        _
      $region10: #{tpu_custom_call.1} parent=5 // pred_check_branch
        %108 = sbr.rel (%p105) target = $region12
      $region11: #{tpu_custom_call.1} parent=5 // pred_region
        %s109 = ssub.s32 %s17, 1
      $region12: #{tpu_custom_call.1} parent=5 // pred_fallthru
        _
      %p110 = scmp.lt.s32.totalorder %s17, 2
      // Predicated region
      $region13: #{tpu_custom_call.1} parent=5 // pred_check
        %p111 = pneg %p110
      $region14: #{tpu_custom_call.1} parent=5 // pred_check_branch
        %113 = sbr.rel (%p111) target = $region16
      $region15: #{tpu_custom_call.1} parent=5 // pred_region
        // Predicated region
        $region17: #{tpu_custom_call.1} parent=15 // pred_check
          %p114 = pneg %p37
        $region18: #{tpu_custom_call.1} parent=15 // pred_check_branch
          %116 = sbr.rel (%p114) target = $region20
        $region19: #{tpu_custom_call.1} parent=15 // pred_region
          %s117 = sand.u32 %s27, 1
          %s118 = scalar_lea.sflag [#allocation3], %s117
          %s119 = sand.u32 %s27, 1
          %s120 = smul.addr %s119, 16
          %s121 = scalar_lea.vmem [#allocation2], %s120
          %s122 = smul.u32 4, %s17
          %s124 = ssub.s32 256, 256
          %125 = vsyncadd %s118, %s124
          %s126 = smul.addr %s122, 64
          %s127 = scalar_lea.hbm %s0, %s126
          %s129 = sshll.u32 %s121, 4
          %s130 = int_to_ptr.vmem [resolvable:$true] %s129
          %132 = dma.hbm_to_vmem [thread:$0]  %s127, 256, %s130, %s118
        $region20: #{tpu_custom_call.1} parent=15 // pred_fallthru
          _
        // Predicated region
        $region21: #{tpu_custom_call.1} parent=15 // pred_check
          %p133 = pneg %p63
        $region22: #{tpu_custom_call.1} parent=15 // pred_check_branch
          %135 = sbr.rel (%p133) target = $region24
        $region23: #{tpu_custom_call.1} parent=15 // pred_region
          %s136 = sand.u32 %s53, 1
          %s137 = scalar_lea.sflag [#allocation6], %s136
          %s138 = sand.u32 %s53, 1
          %s139 = smul.addr %s138, 4
          %s140 = scalar_lea.vmem [#allocation5], %s139
          %s141 = smul.u32 4, %s17
          %s143 = ssub.s32 64, 64
          %144 = vsyncadd %s137, %s143
          %s145 = smul.addr %s141, 16
          %s146 = scalar_lea.hbm %s1, %s145
          %s148 = sshll.u32 %s140, 4
          %s149 = int_to_ptr.vmem [resolvable:$true] %s148
          %151 = dma.hbm_to_vmem [thread:$0]  %s146, 64, %s149, %s137
        $region24: #{tpu_custom_call.1} parent=15 // pred_fallthru
          _
      $region16: #{tpu_custom_call.1} parent=5 // pred_fallthru
        _
      %p152 = scmp.le.s32.totalorder 1, %s17
      %p153 = scmp.lt.s32.totalorder %s17, 3
      %p154 = pnand %p152, %p153
      %p155 = pneg %p154
      // Predicated region
      $region25: #{tpu_custom_call.1} parent=5 // pred_check
        _
      $region26: #{tpu_custom_call.1} parent=5 // pred_check_branch
        %157 = sbr.rel (%p154) target = $region28
      $region27: #{tpu_custom_call.1} parent=5 // pred_region
        %s158 = ssub.s32 %s17, 1
        %s159 = sand.u32 %s30, 1
        %s160 = scalar_lea.sflag [#allocation3], %s159
        %s161 = sand.u32 %s30, 1
        %s162 = smul.addr %s161, 16
        %s163 = scalar_lea.vmem [#allocation2], %s162
        // Predicated region
        $region29: #{tpu_custom_call.1} parent=27 // pred_check
          %p164 = pneg %p43
        $region30: #{tpu_custom_call.1} parent=27 // pred_check_branch
          %166 = sbr.rel (%p164) target = $region32
        $region31: #{tpu_custom_call.1} parent=27 // pred_region
          %167 = dma.done %s160, 256
        $region32: #{tpu_custom_call.1} parent=27 // pred_fallthru
          _
        %s168 = sand.u32 %s56, 1
        %s169 = scalar_lea.sflag [#allocation6], %s168
        %s170 = sand.u32 %s56, 1
        %s171 = smul.addr %s170, 4
        %s172 = scalar_lea.vmem [#allocation5], %s171
        // Predicated region
        $region33: #{tpu_custom_call.1} parent=27 // pred_check
          %p173 = pneg %p69
        $region34: #{tpu_custom_call.1} parent=27 // pred_check_branch
          %175 = sbr.rel (%p173) target = $region36
        $region35: #{tpu_custom_call.1} parent=27 // pred_region
          %176 = dma.done %s169, 64
        $region36: #{tpu_custom_call.1} parent=27 // pred_fallthru
          _
        %s177 = sand.u32 %s30, 1
        %s178 = scalar_lea.sflag [#allocation3], %s177
        %s179 = sand.u32 %s30, 1
        %s180 = smul.addr %s179, 16
        %s181 = scalar_lea.vmem [#allocation2], %s180
        %p182 = pneg %p43
        %p183 = pneg %p40
        %s184 = sand.u32 %s56, 1
        %s185 = scalar_lea.sflag [#allocation6], %s184
        %s186 = sand.u32 %s56, 1
        %s187 = smul.addr %s186, 4
        %s188 = scalar_lea.vmem [#allocation5], %s187
        %p189 = pneg %p69
        %p190 = pneg %p66
        %p191 = pneg %p95
        %p192 = pneg %p92
        %s193 = sand.u32 %s82, 1
        %s194 = scalar_lea.sflag [#allocation4], %s193
        %s195 = sand.u32 %s82, 1
        %s196 = smul.addr %s195, 4
        %s197 = scalar_lea.vmem [#allocation7], %s196
        %s198 = smul.u32 4, %s22
        %s199 = smul.u32 4, %s22
        %s200 = smul.u32 4, %s22
        %v201 = vld [vmem:[%s163] sm:$0x11]
        %v202 = vld [vmem:[%s163 + $0x8] sm:$0x11]
        %v203 = vunpack.c.l.bf16 %v201
        %v204 = vunpack.c.h.bf16 %v201
        %v205 = vunpack.c.l.bf16 %v202
        %v206 = vunpack.c.h.bf16 %v202
        %v207 = vld [vmem:[%s172] sm:$0xf]
        %v208 = vunpack.c.l.bf16 %v207
        %v210 = vlaneseq
        %v211 = vshrl.u32 %v210, 7
        %v212 = vsub.s32 0, %v211
        %v213 = vrot.slane %v208, %v212
        %v214 = vlaneseq
        %v215 = vshrl.u32 %v214, 7
        %v216 = vsub.s32 2, %v215
        %v217 = vrot.slane %v208, %v216
        %v218 = vlaneseq
        %v219 = vshrl.u32 %v218, 7
        %v220 = vsub.s32 4, %v219
        %v221 = vrot.slane %v208, %v220
        %v222 = vlaneseq
        %v223 = vshrl.u32 %v222, 7
        %v224 = vsub.s32 6, %v223
        %v225 = vrot.slane %v208, %v224
        %v230 = vlaneseq
        %v231 = vshrl.u32 %v230, 7
        %v232 = vsub.s32 0, %v231
        %v233 = vrot.slane %v213, %v232
        %v234 = vlaneseq
        %v235 = vshrl.u32 %v234, 7
        %v236 = vsub.s32 0, %v235
        %v237 = vrot.slane %v217, %v236
        %v238 = vlaneseq
        %v239 = vshrl.u32 %v238, 7
        %v240 = vsub.s32 0, %v239
        %v241 = vrot.slane %v221, %v240
        %v242 = vlaneseq
        %v243 = vshrl.u32 %v242, 7
        %v244 = vsub.s32 0, %v243
        %v245 = vrot.slane %v225, %v244
        %v246 = vsub.f32 %v203, %v233
        %v247 = vsub.f32 %v204, %v237
        %v248 = vsub.f32 %v205, %v241
        %v249 = vsub.f32 %v206, %v245
        %v250 = vand.u32 2147483647, %v246
        %v251 = vand.u32 2147483647, %v247
        %v252 = vand.u32 2147483647, %v248
        %v253 = vand.u32 2147483647, %v249
        %vm254 = vcmask 1041408
        %v255 = vsel %vm254, %v250, 0.0
        %v256 = vrot.slane %v255, 4
        %v257 = vadd.f32 %v255, %v256
        %v258 = vrot.slane %v257, 2
        %v259 = vadd.f32 %v257, %v258
        %v260 = vrot.slane %v259, 1
        %v261 = vadd.f32 %v259, %v260
        %v262 = vsel %vm254, %v251, 0.0
        %v263 = vrot.slane %v262, 4
        %v264 = vadd.f32 %v262, %v263
        %v265 = vrot.slane %v264, 2
        %v266 = vadd.f32 %v264, %v265
        %v267 = vrot.slane %v266, 1
        %v268 = vadd.f32 %v266, %v267
        %v269 = vsel %vm254, %v252, 0.0
        %v270 = vrot.slane %v269, 4
        %v271 = vadd.f32 %v269, %v270
        %v272 = vrot.slane %v271, 2
        %v273 = vadd.f32 %v271, %v272
        %v274 = vrot.slane %v273, 1
        %v275 = vadd.f32 %v273, %v274
        %v276 = vsel %vm254, %v253, 0.0
        %v277 = vrot.slane %v276, 4
        %v278 = vadd.f32 %v276, %v277
        %v279 = vrot.slane %v278, 2
        %v280 = vadd.f32 %v278, %v279
        %v281 = vrot.slane %v280, 1
        %v282 = vadd.f32 %v280, %v281
        %v287 = vcombine.low %v261, %v268
        %v288 = vcombine.low %v275, %v282
        %v290 = vunpack.c.l.s4 1966171168
        %v291 = vunpack.c.0.s8 %v290
        %v292 = vlaneseq
        %v293 = vshrl.u32 %v292, 7
        %v294 = vsub.s32 %v291, %v293
        %v295 = vrot.slane %v287, %v294
        %v297 = vunpack.c.l.s4 1966171168
        %v298 = vunpack.c.0.s8 %v297
        %v299 = vlaneseq
        %v300 = vshrl.u32 %v299, 7
        %v301 = vsub.s32 %v298, %v300
        %v302 = vrot.slane %v288, %v301
        %v303 = vcombine.low %v295, %v302
        %v305 = vunpack.c.l.s4 1966171168
        %v306 = vunpack.c.0.s8 %v305
        %v307 = vlaneseq
        %v308 = vshrl.u32 %v307, 7
        %v309 = vsub.s32 %v306, %v308
        %v310 = vrot.slane %v303, %v309
        %v312 = vlaneseq
        %vm313 = vcmp.ge.s32.totalorder %v312, 0
        %vm314 = vcmp.lt.s32.totalorder %v312, 512
        %vm315 = vmand %vm313, %vm314
        %316 = vst.msk [vmem:[%s197] sm:$0xf] %vm315, %v310
        %s317 = sand.u32 %s82, 1
        %s318 = scalar_lea.sflag [#allocation4], %s317
        %s319 = sand.u32 %s82, 1
        %s320 = smul.addr %s319, 4
        %s321 = scalar_lea.vmem [#allocation7], %s320
        // Predicated region
        $region37: #{tpu_custom_call.1} parent=27 // pred_check
          %p322 = pneg %p92
        $region38: #{tpu_custom_call.1} parent=27 // pred_check_branch
          %324 = sbr.rel (%p322) target = $region40
        $region39: #{tpu_custom_call.1} parent=27 // pred_region
          %s325 = smul.u32 4, %s22
          %s327 = ssub.s32 64, 64
          %328 = vsyncadd %s318, %s327
          %s329 = smul.addr %s325, 16
          %s330 = scalar_lea.hbm %s2, %s329
          %s332 = sshll.u32 %s321, 4
          %s333 = int_to_ptr.vmem [resolvable:$true] %s332
          %335 = dma.vmem_to_hbm [thread:$0]  %s333, 64, %s330, %s318
        $region40: #{tpu_custom_call.1} parent=27 // pred_fallthru
          _
      $region28: #{tpu_custom_call.1} parent=5 // pred_fallthru
        _
      %p336 = scmp.le.s32.totalorder 2, %s17
      // Predicated region
      $region41: #{tpu_custom_call.1} parent=5 // pred_check
        %p337 = pneg %p336
      $region42: #{tpu_custom_call.1} parent=5 // pred_check_branch
        %339 = sbr.rel (%p337) target = $region44
      $region43: #{tpu_custom_call.1} parent=5 // pred_region
        %s340 = ssub.s32 %s17, 2
        // Predicated region
        $region45: #{tpu_custom_call.1} parent=43 // pred_check
          %p341 = pneg %p98
        $region46: #{tpu_custom_call.1} parent=43 // pred_check_branch
          %343 = sbr.rel (%p341) target = $region48
        $region47: #{tpu_custom_call.1} parent=43 // pred_region
          %s344 = sand.u32 %s83, 1
          %s345 = scalar_lea.sflag [#allocation4], %s344
          %s346 = sand.u32 %s83, 1
          %s347 = smul.addr %s346, 4
          %s348 = scalar_lea.vmem [#allocation7], %s347
          %349 = dma.done %s345, 64
        $region48: #{tpu_custom_call.1} parent=43 // pred_fallthru
          _
      $region44: #{tpu_custom_call.1} parent=5 // pred_fallthru
        _
    $region6: #{tpu_custom_call.1} parent=1 // loop_footer
      %s21 = sadd.s32 1, %s17
    $region7: #{tpu_custom_call.1} parent=1 // loop_footer_branch
      %16 = sbr.rel target = $region3
    $region8: #{tpu_custom_call.1} parent=1 // loop_exit
      _
    %350 = vsyncpa [#allocation3], 1
    %s351 = scalar_lea.sflag [#allocation3], 1
    %352 = vsyncpa %s351, 1
    %353 = vsyncpa [#allocation6], 1
    %s354 = scalar_lea.sflag [#allocation6], 1
    %355 = vsyncpa %s354, 1
    %356 = vsyncpa [#allocation4], 1
    %s357 = scalar_lea.sflag [#allocation4], 1
    %358 = vsyncpa %s357, 1

</llo_original>
